<compile_context>
chip_gen: v7x
topology: tpu7x:2x2x1
jax: 0.10.0
libtpu: 0.0.40
codegen_flags: <defaults>
</compile_context>

<pallas_src>
import jax
import jax.numpy as jnp
from jax.experimental import pallas as pl
from jax.experimental.pallas import tpu as pltpu

HIDDEN_LAYER_SIZE1 = 64
HIDDEN_LAYER_SIZE2 = 32
LEAKY_SLOPE = 0.01  # PyTorch nn.LeakyReLU default negative_slope


def _leaky_relu(x):
    return jnp.where(x > 0, x, LEAKY_SLOPE * x)


def _round_up(x, m):
    return ((x + m - 1) // m) * m


def actor_kernel(x_ref, w1_ref, b1_ref, w2_ref, b2_ref, w3_ref, b3_ref, o_ref):
    # One batch tile per grid step. Dots run on the MXU with f32 accumulation;
    # bias add / leaky_relu / tanh run on the VPU/EUP in f32.
    compute_dtype = w1_ref.dtype

    x = x_ref[...]  # [TB, in]  (f32 or bf16, matching the weights)

    h1 = jnp.dot(x, w1_ref[...], preferred_element_type=jnp.float32) + b1_ref[...]
    h1 = _leaky_relu(h1).astype(compute_dtype)

    h2 = jnp.dot(h1, w2_ref[...], preferred_element_type=jnp.float32) + b2_ref[...]
    h2 = _leaky_relu(h2).astype(compute_dtype)

    h3 = jnp.dot(h2, w3_ref[...], preferred_element_type=jnp.float32) + b3_ref[...]
    o_ref[...] = (jnp.tanh(h3) * 3.0).astype(o_ref.dtype)


def actor_forward(state, params, *, batch_tile=512, use_bf16=True):
    """state: [B, input_size] float32 -> [B, output_size] float32."""
    w1, b1, w2, b2, w3, b3 = params
    B, in_size = state.shape
    out_size = w3.shape[1]

    # ---- lane-dense output: pad final-layer columns to a multiple of 128 ----
    out_pad = _round_up(out_size, 128)
    if out_pad != out_size:
        w3p = jnp.zeros((w3.shape[0], out_pad), w3.dtype).at[:, :out_size].set(w3)
        b3p = jnp.zeros((1, out_pad), b3.dtype).at[:, :out_size].set(b3)
    else:
        w3p, b3p = w3, b3

    # ---- batch tiling (multiple of 16 so f32 and bf16 layouts are both happy) ----
    tb = _round_up(min(batch_tile, _round_up(B, 16)), 16)
    b_pad = _round_up(B, tb)
    if b_pad != B:
        state = jnp.pad(state, ((0, b_pad - B), (0, 0)))

    # ---- dtype handling: bf16 dot operands, f32 biases / elementwise ----
    compute_dtype = jnp.bfloat16 if use_bf16 else jnp.float32
    x = state.astype(compute_dtype)
    w1c = w1.astype(compute_dtype)
    w2c = w2.astype(compute_dtype)
    w3c = w3p.astype(compute_dtype)
    b1c = b1.astype(jnp.float32)
    b2c = b2.astype(jnp.float32)
    b3c = b3p.astype(jnp.float32)

    const = lambda i: (0, 0)  # weights/biases resident across all grid steps
    grid = (b_pad // tb,)

    out = pl.pallas_call(
        actor_kernel,
        out_shape=jax.ShapeDtypeStruct((b_pad, out_pad), jnp.float32),
        grid=grid,
        in_specs=[
            pl.BlockSpec((tb, in_size), lambda i: (i, 0)),  # state tile
            pl.BlockSpec(w1c.shape, const),
            pl.BlockSpec(b1c.shape, const),
            pl.BlockSpec(w2c.shape, const),
            pl.BlockSpec(b2c.shape, const),
            pl.BlockSpec(w3c.shape, const),
            pl.BlockSpec(b3c.shape, const),
        ],
        out_specs=pl.BlockSpec((tb, out_pad), lambda i: (i, 0)),
        compiler_params=pltpu.CompilerParams(
            dimension_semantics=("parallel",),
        ),
    )(x, w1c, b1c, w2c, b2c, w3c, b3c)

    return out[:B, :out_size]


def init_actor_params(key, input_size, output_size):
    """Deterministic init mimicking PyTorch nn.Linear default (U[-1/sqrt(fan_in), +])."""
    def linear(k, fan_in, fan_out):
        kw, kb = jax.random.split(k)
        bound = 1.0 / jnp.sqrt(fan_in)
        w = jax.random.uniform(kw, (fan_in, fan_out), jnp.float32, -bound, bound)
        b = jax.random.uniform(kb, (1, fan_out), jnp.float32, -bound, bound)
        return w, b

    k1, k2, k3 = jax.random.split(key, 3)
    w1, b1 = linear(k1, input_size, HIDDEN_LAYER_SIZE1)
    w2, b2 = linear(k2, HIDDEN_LAYER_SIZE1, HIDDEN_LAYER_SIZE2)
    w3, b3 = linear(k3, HIDDEN_LAYER_SIZE2, output_size)
    return (w1, b1, w2, b2, w3, b3)


def actor_reference(state, params):
    """Pure-JAX f32 reference for correctness check."""
    w1, b1, w2, b2, w3, b3 = params
    h1 = state @ w1 + b1
    h2 = _leaky_relu(h1) @ w2 + b2
    h2 = _leaky_relu(h2)
    return jnp.tanh(h2 @ w3 + b3) * 3.0


if __name__ == "__main__":
    input_size = 16
    output_size = 4
    batch = 8

    key = jax.random.PRNGKey(0)
    k_params, k_state = jax.random.split(key)

    params = init_actor_params(k_params, input_size, output_size)
    state = jax.random.normal(k_state, (batch, input_size), jnp.float32)

    ref = actor_reference(state, params)

    # f32 path: tight tolerance.
    out_f32 = jax.block_until_ready(actor_forward(state, params, use_bf16=False))
    assert out_f32.shape == (batch, output_size), out_f32.shape
    assert jnp.allclose(out_f32, ref, atol=1e-5, rtol=1e-5), (
        f"f32 max abs err {jnp.max(jnp.abs(out_f32 - ref))}"
    )

    # bf16-operand path (the bandwidth-optimized one): loosened tolerance.
    out_bf16 = jax.block_until_ready(actor_forward(state, params, use_bf16=True))
    assert out_bf16.shape == (batch, output_size), out_bf16.shape
    assert jnp.allclose(out_bf16, ref, atol=3e-2, rtol=3e-2), (
        f"bf16 max abs err {jnp.max(jnp.abs(out_bf16 - ref))}"
    )

    print("KERNEL_OK")
</pallas_src>

<mosaic_0001>
module attributes {stable_mosaic.version = 11 : i64} {
  func.func @actor_kernel(%arg0: i32, %arg1: memref<16x16xf32, #tpu.memory_space<vmem>>, %arg2: memref<16x64xf32, #tpu.memory_space<vmem>>, %arg3: memref<1x64xf32, #tpu.memory_space<vmem>>, %arg4: memref<64x32xf32, #tpu.memory_space<vmem>>, %arg5: memref<1x32xf32, #tpu.memory_space<vmem>>, %arg6: memref<32x128xf32, #tpu.memory_space<vmem>>, %arg7: memref<1x128xf32, #tpu.memory_space<vmem>>, %arg8: memref<16x128xf32, #tpu.memory_space<vmem>>) attributes {dimension_semantics = [#tpu.dimension_semantics<parallel>], iteration_bounds = array<i64: 1>, scalar_prefetch = 0 : i64, scratch_operands = 0 : i64, tpu.core_type = #tpu.core_type<tc>, window_params = [{transform_indices = @transform_0, window_bounds = array<i64: 16, 16>}, {pipeline_mode = #tpu.pipeline_mode<synchronous>, transform_indices = @transform_1, window_bounds = array<i64: 16, 64>}, {pipeline_mode = #tpu.pipeline_mode<synchronous>, transform_indices = @transform_2, window_bounds = array<i64: 1, 64>}, {pipeline_mode = #tpu.pipeline_mode<synchronous>, transform_indices = @transform_3, window_bounds = array<i64: 64, 32>}, {pipeline_mode = #tpu.pipeline_mode<synchronous>, transform_indices = @transform_4, window_bounds = array<i64: 1, 32>}, {pipeline_mode = #tpu.pipeline_mode<synchronous>, transform_indices = @transform_5, window_bounds = array<i64: 32, 128>}, {pipeline_mode = #tpu.pipeline_mode<synchronous>, transform_indices = @transform_6, window_bounds = array<i64: 1, 128>}, {transform_indices = @transform_7, window_bounds = array<i64: 16, 128>}]} {
    %c0 = arith.constant 0 : index
    %c0_0 = arith.constant 0 : index
    %0 = vector.load %arg1[%c0, %c0_0] : memref<16x16xf32, #tpu.memory_space<vmem>>, vector<16x16xf32>
    %c0_1 = arith.constant 0 : index
    %c0_2 = arith.constant 0 : index
    %1 = vector.load %arg2[%c0_1, %c0_2] : memref<16x64xf32, #tpu.memory_space<vmem>>, vector<16x64xf32>
    %cst = arith.constant dense<0.000000e+00> : vector<16x64xf32>
    %2 = tpu.matmul %0, %1, %cst {dimension_numbers = #tpu.dot_dimension_numbers<[1], [0], [0], [1], [0, 0, 1, 1], [], []>} : vector<16x16xf32>, vector<16x64xf32>, vector<16x64xf32> -> vector<16x64xf32>
    %c0_3 = arith.constant 0 : index
    %c0_4 = arith.constant 0 : index
    %3 = vector.load %arg3[%c0_3, %c0_4] : memref<1x64xf32, #tpu.memory_space<vmem>>, vector<1x64xf32>
    %4 = vector.broadcast %3 : vector<1x64xf32> to vector<16x64xf32>
    %5 = arith.addf %2, %4 : vector<16x64xf32>
    %cst_5 = arith.constant 0.000000e+00 : f32
    %6 = vector.broadcast %cst_5 : f32 to vector<16x64xf32>
    %7 = arith.cmpf ogt, %5, %6 : vector<16x64xf32>
    %cst_6 = arith.constant 0.00999999977 : f32
    %8 = vector.broadcast %cst_6 : f32 to vector<16x64xf32>
    %9 = arith.mulf %8, %5 : vector<16x64xf32>
    %10 = arith.select %7, %5, %9 : vector<16x64xi1>, vector<16x64xf32>
    %c0_7 = arith.constant 0 : index
    %c0_8 = arith.constant 0 : index
    %11 = vector.load %arg4[%c0_7, %c0_8] : memref<64x32xf32, #tpu.memory_space<vmem>>, vector<64x32xf32>
    %cst_9 = arith.constant dense<0.000000e+00> : vector<16x32xf32>
    %12 = tpu.matmul %10, %11, %cst_9 {dimension_numbers = #tpu.dot_dimension_numbers<[1], [0], [0], [1], [0, 0, 1, 1], [], []>} : vector<16x64xf32>, vector<64x32xf32>, vector<16x32xf32> -> vector<16x32xf32>
    %c0_10 = arith.constant 0 : index
    %c0_11 = arith.constant 0 : index
    %13 = vector.load %arg5[%c0_10, %c0_11] : memref<1x32xf32, #tpu.memory_space<vmem>>, vector<1x32xf32>
    %14 = vector.broadcast %13 : vector<1x32xf32> to vector<16x32xf32>
    %15 = arith.addf %12, %14 : vector<16x32xf32>
    %cst_12 = arith.constant 0.000000e+00 : f32
    %16 = vector.broadcast %cst_12 : f32 to vector<16x32xf32>
    %17 = arith.cmpf ogt, %15, %16 : vector<16x32xf32>
    %cst_13 = arith.constant 0.00999999977 : f32
    %18 = vector.broadcast %cst_13 : f32 to vector<16x32xf32>
    %19 = arith.mulf %18, %15 : vector<16x32xf32>
    %20 = arith.select %17, %15, %19 : vector<16x32xi1>, vector<16x32xf32>
    %c0_14 = arith.constant 0 : index
    %c0_15 = arith.constant 0 : index
    %21 = vector.load %arg6[%c0_14, %c0_15] : memref<32x128xf32, #tpu.memory_space<vmem>>, vector<32x128xf32>
    %cst_16 = arith.constant dense<0.000000e+00> : vector<16x128xf32>
    %22 = tpu.matmul %20, %21, %cst_16 {dimension_numbers = #tpu.dot_dimension_numbers<[1], [0], [0], [1], [0, 0, 1, 1], [], []>} : vector<16x32xf32>, vector<32x128xf32>, vector<16x128xf32> -> vector<16x128xf32>
    %c0_17 = arith.constant 0 : index
    %c0_18 = arith.constant 0 : index
    %23 = vector.load %arg7[%c0_17, %c0_18] : memref<1x128xf32, #tpu.memory_space<vmem>>, vector<1x128xf32>
    %24 = vector.broadcast %23 : vector<1x128xf32> to vector<16x128xf32>
    %25 = arith.addf %22, %24 : vector<16x128xf32>
    %26 = math.tanh %25 : vector<16x128xf32>
    %cst_19 = arith.constant 3.000000e+00 : f32
    %27 = vector.broadcast %cst_19 : f32 to vector<16x128xf32>
    %28 = arith.mulf %26, %27 : vector<16x128xf32>
    %c0_20 = arith.constant 0 : index
    %c0_21 = arith.constant 0 : index
    %29 = vector.load %arg8[%c0_20, %c0_21] : memref<16x128xf32, #tpu.memory_space<vmem>>, vector<16x128xf32>
    tpu.vector_store %arg8[%c0_20, %c0_21], %28 {strides = array<i32>} : memref<16x128xf32, #tpu.memory_space<vmem>>, vector<16x128xf32>,
    return
  }
  func.func @transform_0(%arg0: i32) -> (i32, i32) {
    %c0_i32 = arith.constant 0 : i32
    %c0_i32_0 = arith.constant 0 : i32
    return %arg0, %c0_i32 : i32, i32
  }
  func.func @transform_1(%arg0: i32) -> (i32, i32) {
    %c0_i32 = arith.constant 0 : i32
    %c0_i32_0 = arith.constant 0 : i32
    %c0_i32_1 = arith.constant 0 : i32
    return %c0_i32, %c0_i32_0 : i32, i32
  }
  func.func @transform_2(%arg0: i32) -> (i32, i32) {
    %c0_i32 = arith.constant 0 : i32
    %c0_i32_0 = arith.constant 0 : i32
    %c0_i32_1 = arith.constant 0 : i32
    return %c0_i32, %c0_i32_0 : i32, i32
  }
  func.func @transform_3(%arg0: i32) -> (i32, i32) {
    %c0_i32 = arith.constant 0 : i32
    %c0_i32_0 = arith.constant 0 : i32
    %c0_i32_1 = arith.constant 0 : i32
    return %c0_i32, %c0_i32_0 : i32, i32
  }
  func.func @transform_4(%arg0: i32) -> (i32, i32) {
    %c0_i32 = arith.constant 0 : i32
    %c0_i32_0 = arith.constant 0 : i32
    %c0_i32_1 = arith.constant 0 : i32
    return %c0_i32, %c0_i32_0 : i32, i32
  }
  func.func @transform_5(%arg0: i32) -> (i32, i32) {
    %c0_i32 = arith.constant 0 : i32
    %c0_i32_0 = arith.constant 0 : i32
    %c0_i32_1 = arith.constant 0 : i32
    return %c0_i32, %c0_i32_0 : i32, i32
  }
  func.func @transform_6(%arg0: i32) -> (i32, i32) {
    %c0_i32 = arith.constant 0 : i32
    %c0_i32_0 = arith.constant 0 : i32
    %c0_i32_1 = arith.constant 0 : i32
    return %c0_i32, %c0_i32_0 : i32, i32
  }
  func.func @transform_7(%arg0: i32) -> (i32, i32) {
    %c0_i32 = arith.constant 0 : i32
    %c0_i32_0 = arith.constant 0 : i32
    return %arg0, %c0_i32 : i32, i32
  }
}

</mosaic_0001>

<llo_original>
// kernel: tpu_custom_call.1
$region0: #{tpu_custom_call.1}
  #allocation0 [shape = 'u32[]', space=smem, size = 0x4, offset = 0x4, fixed_abs, tag = 'smem constant byte address 0x4 - core index']
  #allocation1 [shape = 'u32[144,128]{1,0:T(1,128)}', space=vmem, size = 0x12000, scoped, tag = 'internal scratch']
  %s0 = inlined_call_operand.vmem [shape: f32[16,16], index: 0, kind: input, shape index: {}]
  %s1 = inlined_call_operand.vmem [shape: f32[16,64], index: 1, kind: input, shape index: {}]
  %s2 = inlined_call_operand.vmem [shape: f32[1,64], index: 2, kind: input, shape index: {}]
  %s3 = inlined_call_operand.vmem [shape: f32[64,32], index: 3, kind: input, shape index: {}]
  %s4 = inlined_call_operand.vmem [shape: f32[1,32], index: 4, kind: input, shape index: {}]
  %s5 = inlined_call_operand.vmem [shape: f32[32,128], index: 5, kind: input, shape index: {}]
  %s6 = inlined_call_operand.vmem [shape: f32[1,128], index: 6, kind: input, shape index: {}]
  %s7 = inlined_call_operand.hbm [shape: f32[16,128], index: 7, kind: output, shape index: {}]
  %s8 = sld [smem:[#allocation0]]
  $region38: #{tpu_custom_call.1} parent=0
    _
  %s10 = ssub.s32 1, %s8
  %s11 = scalar_select 0, %s10, %s8
  $region1: #{tpu_custom_call.1} parent=0
    #allocation2 [shape = 'u8[8192]{0}', space=vmem, size = 0x2000, scoped, tag = 'output window, operand 0, single buffered']
    #allocation3 [shape = 's32[1]{0}', space=sflag, size = 0x4, scoped, tag = 'scoped memory for tpu_custom_call.1']
    %12 = vsyncpa [#allocation3], 0
    // Predicated region
    $region2: #{tpu_custom_call.1} parent=1 // pred_check
      _
    $region3: #{tpu_custom_call.1} parent=1 // pred_check_branch
      %14 = sbr.rel (0) target = $region5
    $region4: #{tpu_custom_call.1} parent=1 // pred_region
      _
    $region5: #{tpu_custom_call.1} parent=1 // pred_fallthru
      _
    // Predicated region
    $region6: #{tpu_custom_call.1} parent=1 // pred_check
      _
    $region7: #{tpu_custom_call.1} parent=1 // pred_check_branch
      %16 = sbr.rel (0) target = $region9
    $region8: #{tpu_custom_call.1} parent=1 // pred_region
      _
    $region9: #{tpu_custom_call.1} parent=1 // pred_fallthru
      _
    // Predicated region
    $region10: #{tpu_custom_call.1} parent=1 // pred_check
      _
    $region11: #{tpu_custom_call.1} parent=1 // pred_check_branch
      %18 = sbr.rel (0) target = $region13
    $region12: #{tpu_custom_call.1} parent=1 // pred_region
      _
    $region13: #{tpu_custom_call.1} parent=1 // pred_fallthru
      _
    // Predicated region
    $region14: #{tpu_custom_call.1} parent=1 // pred_check
      _
    $region15: #{tpu_custom_call.1} parent=1 // pred_check_branch
      %20 = sbr.rel (0) target = $region17
    $region16: #{tpu_custom_call.1} parent=1 // pred_region
      _
    $region17: #{tpu_custom_call.1} parent=1 // pred_fallthru
      _
    // Predicated region
    $region18: #{tpu_custom_call.1} parent=1 // pred_check
      _
    $region19: #{tpu_custom_call.1} parent=1 // pred_check_branch
      %22 = sbr.rel (0) target = $region21
    $region20: #{tpu_custom_call.1} parent=1 // pred_region
      _
    $region21: #{tpu_custom_call.1} parent=1 // pred_fallthru
      _
    // Predicated region
    $region22: #{tpu_custom_call.1} parent=1 // pred_check
      _
    $region23: #{tpu_custom_call.1} parent=1 // pred_check_branch
      %24 = sbr.rel (0) target = $region25
    $region24: #{tpu_custom_call.1} parent=1 // pred_region
      _
    $region25: #{tpu_custom_call.1} parent=1 // pred_fallthru
      _
    // Predicated region
    $region26: #{tpu_custom_call.1} parent=1 // pred_check
      _
    $region27: #{tpu_custom_call.1} parent=1 // pred_check_branch
      %26 = sbr.rel (0) target = $region29
    $region28: #{tpu_custom_call.1} parent=1 // pred_region
      _
    $region29: #{tpu_custom_call.1} parent=1 // pred_fallthru
      _
    %v27 = vld [vmem:[%s0] sm:$0xff]
    %v28 = vld [vmem:[%s0 + $0x8] sm:$0xff]
    %v29 = vld [vmem:[%s1] sm:$0xff]
    %v30 = vld [vmem:[%s1 + $0x8] sm:$0xff]
    %v31 = vld [vmem:[%s2] sm:$0x1]
    %v33 = vlaneseq
    %v34 = vshrl.u32 %v33, 7
    %v35 = vsub.s32 0, %v34
    %v36 = vrot.slane %v31, %v35
    %vm38 = vcmask 130048
    %v40 = vsel %vm38, %v27, 0
    %v43 = vsel %vm38, %v28, 0
    %45 = vmatprep.subr.mxu0 0.0
    %46 = vmatpush1.msra.mxu0 %v29
    %47 = vmatprep.subr.mxu0 0.0
    %48 = vmatpush1.msra.mxu0 %v30
    %49 = vmatprep.subr.mxu0 0.0
    %50 = vmatpush1.msra.mxu0 0.0
    %51 = vmatprep.subr.mxu0 0.0
    %52 = vmatpush1.msra.mxu0 0.0
    %53 = vmatprep.subr.mxu0 0.0
    %54 = vmatpush1.msra.mxu0 0.0
    %55 = vmatprep.subr.mxu0 0.0
    %56 = vmatpush1.msra.mxu0 0.0
    %57 = vmatprep.subr.mxu0 0.0
    %58 = vmatpush1.msra.mxu0 0.0
    %59 = vmatprep.subr.mxu0 0.0
    %60 = vmatpush1.msra.mxu0 0.0
    %61 = vmatprep.subr.mxu0 0.0
    %62 = vmatpush1.msra.mxu0 0.0
    %63 = vmatprep.subr.mxu0 0.0
    %64 = vmatpush1.msra.mxu0 0.0
    %65 = vmatprep.subr.mxu0 0.0
    %66 = vmatpush1.msra.mxu0 0.0
    %67 = vmatprep.subr.mxu0 0.0
    %68 = vmatpush1.msra.mxu0 0.0
    %69 = vmatprep.subr.mxu0 0.0
    %70 = vmatpush1.msra.mxu0 0.0
    %71 = vmatprep.subr.mxu0 0.0
    %72 = vmatpush1.msra.mxu0 0.0
    %73 = vmatprep.subr.mxu0 0.0
    %74 = vmatpush1.msra.mxu0 0.0
    %75 = vmatprep.subr.mxu0 0.0
    %76 = vmatpush1.msra.mxu0 0.0
    %77 = vmatprep.subr.mxu0 0.0
    %78 = vmatpush1.msra.mxu0 0.0
    %79 = vmatprep.subr.mxu0 0.0
    %80 = vmatpush1.msra.mxu0 0.0
    %81 = vmatprep.subr.mxu0 0.0
    %82 = vmatpush1.msra.mxu0 0.0
    %83 = vmatprep.subr.mxu0 0.0
    %84 = vmatpush1.msra.mxu0 0.0
    %85 = vmatprep.subr.mxu0 0.0
    %86 = vmatpush1.msra.mxu0 0.0
    %87 = vmatprep.subr.mxu0 0.0
    %88 = vmatpush1.msra.mxu0 0.0
    %89 = vmatprep.subr.mxu0 0.0
    %90 = vmatpush1.msra.mxu0 0.0
    %91 = vmatprep.subr.mxu0 0.0
    %92 = vmatpush1.msra.mxu0 0.0
    %93 = vmatprep.subr.mxu0 0.0
    %94 = vmatpush1.msra.mxu0 0.0
    %95 = vmatprep.subr.mxu0 0.0
    %96 = vmatpush1.msra.mxu0 0.0
    %97 = vmatprep.subr.mxu0 0.0
    %98 = vmatpush1.msra.mxu0 0.0
    %99 = vmatprep.subr.mxu0 0.0
    %100 = vmatpush1.msra.mxu0 0.0
    %101 = vmatprep.subr.mxu0 0.0
    %102 = vmatpush1.msra.mxu0 0.0
    %103 = vmatprep.subr.mxu0 0.0
    %104 = vmatpush1.msra.mxu0 0.0
    %105 = vmatprep.subr.mxu0 0.0
    %106 = vmatpush1.msra.mxu0 0.0
    %107 = vmatprep.subr.mxu0 0.0
    %108 = vmatpush1.msra.mxu0 0.0
    %109 = vmatprep.mubr.f32.mxu0 0.0
    %110 = vmatmul.mubr.f32.gmra.mrb[0].mxu0 %v40
    %v111 = vpop.f32.mrb[0].mxu0
    %v112 = vadd.f32 %v36, %v111
    %v113 = vpop.f32.mrb[0].mxu0
    %114 = vmatprep.mubr.f32.mxu0 0.0
    %115 = vmatmul.mubr.f32.gmra.mrb[0].mxu0 %v43
    %v116 = vpop.f32.mrb[0].mxu0
    %v117 = vadd.f32 %v36, %v116
    %v118 = vpop.f32.mrb[0].mxu0
    %119 = vdwg.mxu0
    %vm120 = vcmp.gt.f32.partialorder %v112, 0.0
    %vm121 = vcmp.gt.f32.partialorder %v117, 0.0
    %v122 = vmul.f32 %v112, 0.01
    %v123 = vmul.f32 %v117, 0.01
    %v124 = vsel %vm120, %v112, %v122
    %v125 = vsel %vm121, %v117, %v123
    %v126 = vld [vmem:[%s3] sm:$0xff]
    %v127 = vld [vmem:[%s3 + $0x8] sm:$0xff]
    %v128 = vld [vmem:[%s3 + $0x10] sm:$0xff]
    %v129 = vld [vmem:[%s3 + $0x18] sm:$0xff]
    %v130 = vld [vmem:[%s3 + $0x20] sm:$0xff]
    %v131 = vld [vmem:[%s3 + $0x28] sm:$0xff]
    %v132 = vld [vmem:[%s3 + $0x30] sm:$0xff]
    %v133 = vld [vmem:[%s3 + $0x38] sm:$0xff]
    %v134 = vld [vmem:[%s4] sm:$0x1]
    %v136 = vlaneseq
    %v137 = vshrl.u32 %v136, 7
    %v138 = vsub.s32 0, %v137
    %v139 = vrot.slane %v134, %v138
    %vm141 = vcmask 523264
    %v143 = vsel %vm141, %v124, 0
    %v146 = vsel %vm141, %v125, 0
    %148 = vmatprep.subr.mxu0 0.0
    %149 = vmatpush1.msra.mxu0 %v126
    %150 = vmatprep.subr.mxu0 0.0
    %151 = vmatpush1.msra.mxu0 %v127
    %152 = vmatprep.subr.mxu0 0.0
    %153 = vmatpush1.msra.mxu0 %v128
    %154 = vmatprep.subr.mxu0 0.0
    %155 = vmatpush1.msra.mxu0 %v129
    %156 = vmatprep.subr.mxu0 0.0
    %157 = vmatpush1.msra.mxu0 %v130
    %158 = vmatprep.subr.mxu0 0.0
    %159 = vmatpush1.msra.mxu0 %v131
    %160 = vmatprep.subr.mxu0 0.0
    %161 = vmatpush1.msra.mxu0 %v132
    %162 = vmatprep.subr.mxu0 0.0
    %163 = vmatpush1.msra.mxu0 %v133
    %164 = vmatprep.subr.mxu0 0.0
    %165 = vmatpush1.msra.mxu0 0.0
    %166 = vmatprep.subr.mxu0 0.0
    %167 = vmatpush1.msra.mxu0 0.0
    %168 = vmatprep.subr.mxu0 0.0
    %169 = vmatpush1.msra.mxu0 0.0
    %170 = vmatprep.subr.mxu0 0.0
    %171 = vmatpush1.msra.mxu0 0.0
    %172 = vmatprep.subr.mxu0 0.0
    %173 = vmatpush1.msra.mxu0 0.0
    %174 = vmatprep.subr.mxu0 0.0
    %175 = vmatpush1.msra.mxu0 0.0
    %176 = vmatprep.subr.mxu0 0.0
    %177 = vmatpush1.msra.mxu0 0.0
    %178 = vmatprep.subr.mxu0 0.0
    %179 = vmatpush1.msra.mxu0 0.0
    %180 = vmatprep.subr.mxu0 0.0
    %181 = vmatpush1.msra.mxu0 0.0
    %182 = vmatprep.subr.mxu0 0.0
    %183 = vmatpush1.msra.mxu0 0.0
    %184 = vmatprep.subr.mxu0 0.0
    %185 = vmatpush1.msra.mxu0 0.0
    %186 = vmatprep.subr.mxu0 0.0
    %187 = vmatpush1.msra.mxu0 0.0
    %188 = vmatprep.subr.mxu0 0.0
    %189 = vmatpush1.msra.mxu0 0.0
    %190 = vmatprep.subr.mxu0 0.0
    %191 = vmatpush1.msra.mxu0 0.0
    %192 = vmatprep.subr.mxu0 0.0
    %193 = vmatpush1.msra.mxu0 0.0
    %194 = vmatprep.subr.mxu0 0.0
    %195 = vmatpush1.msra.mxu0 0.0
    %196 = vmatprep.subr.mxu0 0.0
    %197 = vmatpush1.msra.mxu0 0.0
    %198 = vmatprep.subr.mxu0 0.0
    %199 = vmatpush1.msra.mxu0 0.0
    %200 = vmatprep.subr.mxu0 0.0
    %201 = vmatpush1.msra.mxu0 0.0
    %202 = vmatprep.subr.mxu0 0.0
    %203 = vmatpush1.msra.mxu0 0.0
    %204 = vmatprep.subr.mxu0 0.0
    %205 = vmatpush1.msra.mxu0 0.0
    %206 = vmatprep.subr.mxu0 0.0
    %207 = vmatpush1.msra.mxu0 0.0
    %208 = vmatprep.subr.mxu0 0.0
    %209 = vmatpush1.msra.mxu0 0.0
    %210 = vmatprep.subr.mxu0 0.0
    %211 = vmatpush1.msra.mxu0 0.0
    %212 = vmatprep.mubr.f32.mxu0 0.0
    %213 = vmatmul.mubr.f32.gmra.mrb[0].mxu0 %v143
    %v214 = vpop.f32.mrb[0].mxu0
    %v215 = vadd.f32 %v139, %v214
    %v216 = vpop.f32.mrb[0].mxu0
    %217 = vmatprep.mubr.f32.mxu0 0.0
    %218 = vmatmul.mubr.f32.gmra.mrb[0].mxu0 %v146
    %v219 = vpop.f32.mrb[0].mxu0
    %v220 = vadd.f32 %v139, %v219
    %v221 = vpop.f32.mrb[0].mxu0
    %222 = vdwg.mxu0
    %vm223 = vcmp.gt.f32.partialorder %v215, 0.0
    %vm224 = vcmp.gt.f32.partialorder %v220, 0.0
    %v225 = vmul.f32 %v215, 0.01
    %v226 = vmul.f32 %v220, 0.01
    %v227 = vsel %vm223, %v215, %v225
    %v228 = vsel %vm224, %v220, %v226
    %v229 = vld [vmem:[%s5] sm:$0xff]
    %v230 = vld [vmem:[%s5 + $0x8] sm:$0xff]
    %v231 = vld [vmem:[%s5 + $0x10] sm:$0xff]
    %v232 = vld [vmem:[%s5 + $0x18] sm:$0xff]
    %v233 = vld [vmem:[%s6] sm:$0x1]
    %v235 = vlaneseq
    %v236 = vshrl.u32 %v235, 7
    %v237 = vsub.s32 0, %v236
    %v238 = vrot.slane %v233, %v237
    %vm240 = vcmask 261120
    %v242 = vsel %vm240, %v227, 0
    %v245 = vsel %vm240, %v228, 0
    %247 = vmatprep.subr.mxu0 0.0
    %248 = vmatpush1.msra.mxu0 %v229
    %249 = vmatprep.subr.mxu0 0.0
    %250 = vmatpush1.msra.mxu0 %v230
    %251 = vmatprep.subr.mxu0 0.0
    %252 = vmatpush1.msra.mxu0 %v231
    %253 = vmatprep.subr.mxu0 0.0
    %254 = vmatpush1.msra.mxu0 %v232
    %255 = vmatprep.subr.mxu0 0.0
    %256 = vmatpush1.msra.mxu0 0.0
    %257 = vmatprep.subr.mxu0 0.0
    %258 = vmatpush1.msra.mxu0 0.0
    %259 = vmatprep.subr.mxu0 0.0
    %260 = vmatpush1.msra.mxu0 0.0
    %261 = vmatprep.subr.mxu0 0.0
    %262 = vmatpush1.msra.mxu0 0.0
    %263 = vmatprep.subr.mxu0 0.0
    %264 = vmatpush1.msra.mxu0 0.0
    %265 = vmatprep.subr.mxu0 0.0
    %266 = vmatpush1.msra.mxu0 0.0
    %267 = vmatprep.subr.mxu0 0.0
    %268 = vmatpush1.msra.mxu0 0.0
    %269 = vmatprep.subr.mxu0 0.0
    %270 = vmatpush1.msra.mxu0 0.0
    %271 = vmatprep.subr.mxu0 0.0
    %272 = vmatpush1.msra.mxu0 0.0
    %273 = vmatprep.subr.mxu0 0.0
    %274 = vmatpush1.msra.mxu0 0.0
    %275 = vmatprep.subr.mxu0 0.0
    %276 = vmatpush1.msra.mxu0 0.0
    %277 = vmatprep.subr.mxu0 0.0
    %278 = vmatpush1.msra.mxu0 0.0
    %279 = vmatprep.subr.mxu0 0.0
    %280 = vmatpush1.msra.mxu0 0.0
    %281 = vmatprep.subr.mxu0 0.0
    %282 = vmatpush1.msra.mxu0 0.0
    %283 = vmatprep.subr.mxu0 0.0
    %284 = vmatpush1.msra.mxu0 0.0
    %285 = vmatprep.subr.mxu0 0.0
    %286 = vmatpush1.msra.mxu0 0.0
    %287 = vmatprep.subr.mxu0 0.0
    %288 = vmatpush1.msra.mxu0 0.0
    %289 = vmatprep.subr.mxu0 0.0
    %290 = vmatpush1.msra.mxu0 0.0
    %291 = vmatprep.subr.mxu0 0.0
    %292 = vmatpush1.msra.mxu0 0.0
    %293 = vmatprep.subr.mxu0 0.0
    %294 = vmatpush1.msra.mxu0 0.0
    %295 = vmatprep.subr.mxu0 0.0
    %296 = vmatpush1.msra.mxu0 0.0
    %297 = vmatprep.subr.mxu0 0.0
    %298 = vmatpush1.msra.mxu0 0.0
    %299 = vmatprep.subr.mxu0 0.0
    %300 = vmatpush1.msra.mxu0 0.0
    %301 = vmatprep.subr.mxu0 0.0
    %302 = vmatpush1.msra.mxu0 0.0
    %303 = vmatprep.subr.mxu0 0.0
    %304 = vmatpush1.msra.mxu0 0.0
    %305 = vmatprep.subr.mxu0 0.0
    %306 = vmatpush1.msra.mxu0 0.0
    %307 = vmatprep.subr.mxu0 0.0
    %308 = vmatpush1.msra.mxu0 0.0
    %309 = vmatprep.subr.mxu0 0.0
    %310 = vmatpush1.msra.mxu0 0.0
    %311 = vmatprep.mubr.f32.mxu0 0.0
    %312 = vmatmul.mubr.f32.gmra.mrb[0].mxu0 %v242
    %v313 = vpop.f32.mrb[0].mxu0
    %v314 = vadd.f32 %v238, %v313
    %v315 = vpop.f32.mrb[0].mxu0
    %316 = vmatprep.mubr.f32.mxu0 0.0
    %317 = vmatmul.mubr.f32.gmra.mrb[0].mxu0 %v245
    %v318 = vpop.f32.mrb[0].mxu0
    %v319 = vadd.f32 %v238, %v318
    %v320 = vpop.f32.mrb[0].mxu0
    %321 = vdwg.mxu0
    %v322 = vtanh.pop %v314
    %v323 = vtanh.pop %v319
    %v324 = vmul.f32 %v322, 3.0
    %v325 = vmul.f32 %v323, 3.0
    %326 = vst [vmem:[#allocation2] sm:$0xff] %v324
    %327 = vst [vmem:[#allocation2 + $0x8] sm:$0xff] %v325
    // Predicated region
    $region30: #{tpu_custom_call.1} parent=1 // pred_check
      _
    $region31: #{tpu_custom_call.1} parent=1 // pred_check_branch
      %329 = sbr.rel (0) target = $region33
    $region32: #{tpu_custom_call.1} parent=1 // pred_region
      %s331 = ssub.s32 256, 256
      %332 = vsyncadd [#allocation3], %s331
      %s333 = sshll.u32 [#allocation2], 4
      %s334 = int_to_ptr.vmem [resolvable:$true] %s333
      %339 = dma.vmem_to_hbm [thread:$0]  %s334, 256, %s7, [#allocation3], 128, 128, 8
    $region33: #{tpu_custom_call.1} parent=1 // pred_fallthru
      _
    // Predicated region
    $region34: #{tpu_custom_call.1} parent=1 // pred_check
      _
    $region35: #{tpu_custom_call.1} parent=1 // pred_check_branch
      %341 = sbr.rel (0) target = $region37
    $region36: #{tpu_custom_call.1} parent=1 // pred_region
      %342 = dma.done [#allocation3], 256
    $region37: #{tpu_custom_call.1} parent=1 // pred_fallthru
      _
    %343 = vsyncpa [#allocation3], 1

</llo_original>
